<compile_context>
chip_gen: v7x
topology: tpu7x:2x2x1
jax: 0.10.0
libtpu: 0.0.40
codegen_flags: <defaults>
</compile_context>

<pallas_src>
import functools

import jax
import jax.numpy as jnp
from jax.experimental import pallas as pl
from jax.experimental.pallas import tpu as pltpu

LANES = 128
SUBLANES = 8
TARGET_BLOCK_BYTES = 1 << 20   # ~1 MiB per input per pipeline buffer


def _cdiv(a, b):
    return -(-a // b)


def _round_up(x, m):
    return _cdiv(x, m) * m


def _num_tensorcores():
    """TensorCores per chip (2 on v7x, 1 on v5e/v6e); conservative fallback 1."""
    try:
        info = pltpu.get_tpu_info()
    except Exception:
        return 1
    for attr in ("num_cores", "core_count", "num_tensorcores",
                 "tensorcores_per_chip", "num_cores_per_chip"):
        n = getattr(info, attr, None)
        if isinstance(n, int) and n >= 1:
            return min(n, 2)
    return 1


def _plan(rows, n_cores, max_row_tile):
    """Choose (row_tile, num_splits, blocks_per_split, total_blocks)."""
    if n_cores > 1 and rows >= 2 * SUBLANES:
        # Give every core a roughly equal share of rows (multiple of 8 so the
        # (8,128) partial fold stays legal), capped at the streaming tile size.
        per_core = _round_up(_cdiv(rows, n_cores), SUBLANES)
        row_tile = min(max_row_tile, per_core)
        num_splits = n_cores
    else:
        row_tile = rows if rows <= max_row_tile else max_row_tile
        num_splits = 1
    total_blocks = _cdiv(rows, row_tile)
    num_splits = min(num_splits, total_blocks)
    blocks_per_split = _cdiv(total_blocks, num_splits)
    return row_tile, num_splits, blocks_per_split, total_blocks


def _mse_kernel(pred_ref, target_ref, out_ref, acc_ref, *,
                row_tile, rows, blocks_per_split, total_blocks, need_mask):
    c = pl.program_id(0)     # parallel split (TensorCore) index
    i = pl.program_id(1)     # sequential block index within the split

    d = pred_ref[...].astype(jnp.float32) - target_ref[...].astype(jnp.float32)
    sq = d * d

    if row_tile % SUBLANES != 0:
        # Only possible when the whole input is one full-dim block
        # (num_splits == blocks_per_split == 1): reduce and write directly.
        out_ref[0, 0] = jnp.sum(sq)
        return

    def fold_rows(x):
        # (row_tile, 128) -> (8, 128): pure cross-vreg VPU adds; the reshape
        # does not cross an (8,128) tile boundary, so it is layout-free.
        return x.reshape(row_tile // SUBLANES, SUBLANES, LANES).sum(axis=0)

    @pl.when(i == 0)
    def _():
        acc_ref[...] = jnp.zeros_like(acc_ref)

    if need_mask:
        blk = c * blocks_per_split + i
        is_interior = (blk + 1) * row_tile <= rows

        @pl.when(is_interior)
        def _():
            acc_ref[...] += fold_rows(sq)

        @pl.when(jnp.logical_not(is_interior))
        def _():
            # Edge block (partial last block, or a clamped duplicate block of a
            # later split): zero out logical rows past the true row count.
            base = blk * row_tile
            rid = jax.lax.broadcasted_iota(jnp.int32, (row_tile, LANES), 0) + base
            acc_ref[...] += fold_rows(
                jnp.where(rid < rows, sq, jnp.float32(0.0)))
    else:
        acc_ref[...] += fold_rows(sq)

    # Finalize: one cross-lane reduction per split, written to SMEM.
    @pl.when(i == pl.num_programs(1) - 1)
    def _():
        out_ref[0, 0] = jnp.sum(acc_ref[...])


def mse_loss_pallas(pred, target):
    assert pred.shape == target.shape, "pred/target shape mismatch"
    assert pred.size > 0, "empty input"
    n_true = pred.size

    # Flatten (free for contiguous row-major inputs); keep native dtype.
    p = pred.reshape(-1)
    t = target.reshape(-1)

    rows = n_true // LANES
    n_main = rows * LANES
    rem = n_true - n_main

    # <=127-element tail folded in on the JAX side (tiny); avoids the full HBM
    # copy of both operands that jnp.pad would cost.
    if rem:
        tp = p[n_main:].astype(jnp.float32)
        tt = t[n_main:].astype(jnp.float32)
        td = tp - tt
        tail_sum = jnp.sum(td * td)
    else:
        tail_sum = jnp.float32(0.0)

    if rows == 0:
        return tail_sum / jnp.float32(n_true)

    p2 = (p[:n_main] if rem else p).reshape(rows, LANES)
    t2 = (t[:n_main] if rem else t).reshape(rows, LANES)

    itemsize = jnp.dtype(pred.dtype).itemsize
    max_row_tile = max(
        SUBLANES,
        (TARGET_BLOCK_BYTES // (LANES * itemsize)) // SUBLANES * SUBLANES)
    n_cores = _num_tensorcores()

    row_tile, num_splits, blocks_per_split, total_blocks = _plan(
        rows, n_cores, max_row_tile)
    covered_rows = num_splits * blocks_per_split * row_tile
    need_mask = covered_rows != rows

    if row_tile % SUBLANES != 0:
        # Direct-write path in the kernel relies on this.
        assert num_splits == 1 and blocks_per_split == 1 and not need_mask

    kernel = functools.partial(
        _mse_kernel,
        row_tile=row_tile,
        rows=rows,
        blocks_per_split=blocks_per_split,
        total_blocks=total_blocks,
        need_mask=need_mask,
    )

    if num_splits * blocks_per_split == total_blocks:
        def in_map(c, i):
            return (c * blocks_per_split + i, 0)
    else:
        def in_map(c, i):
            # Clamp so the DMA never reads past the last block; clamped blocks
            # are fully masked in-kernel (logical row ids >= rows).
            return (jnp.minimum(c * blocks_per_split + i, total_blocks - 1), 0)

    partials = pl.pallas_call(
        kernel,
        out_shape=jax.ShapeDtypeStruct((num_splits, 1), jnp.float32),
        grid_spec=pltpu.PrefetchScalarGridSpec(
            num_scalar_prefetch=0,
            grid=(num_splits, blocks_per_split),
            in_specs=[
                pl.BlockSpec((row_tile, LANES), in_map),
                pl.BlockSpec((row_tile, LANES), in_map),
            ],
            out_specs=pl.BlockSpec(
                (1, 1), lambda c, i: (c, 0), memory_space=pltpu.SMEM
            ),
            scratch_shapes=[pltpu.VMEM((SUBLANES, LANES), jnp.float32)],
        ),
        compiler_params=pltpu.CompilerParams(
            dimension_semantics=("parallel", "arbitrary"),
            vmem_limit_bytes=32 * 1024 * 1024,
        ),
        cost_estimate=pl.CostEstimate(
            flops=2 * n_main,
            transcendentals=0,
            bytes_accessed=2 * n_main * itemsize + 4 * num_splits,
        ),
    )(p2, t2)

    return (jnp.sum(partials) + tail_sum) / jnp.float32(n_true)


if __name__ == "__main__":
    key = jax.random.PRNGKey(0)
    k_pred, k_target = jax.random.split(key)

    def check(shape):
        pred = jax.random.normal(k_pred, shape, dtype=jnp.float32)
        target = jax.random.normal(k_target, shape, dtype=jnp.float32)
        loss = mse_loss_pallas(pred, target)
        jax.block_until_ready(loss)
        ref = jnp.mean((pred - target) ** 2)
        assert jnp.allclose(loss, ref, rtol=1e-5, atol=1e-6), (shape, loss, ref)

    # NCHW prediction/target maps, consistent with the module's forward.
    check((2, 4, 16, 16))
    # Element count not a multiple of 128 (wrapper-side tail path).
    check((3, 5, 7, 11))
    # Multi-block streaming path: >2048 rows -> multiple grid steps plus a
    # partially-filled (masked) final block.
    check((2, 4, 360, 100))

    print("KERNEL_OK")
</pallas_src>

<mosaic_0001>
module attributes {stable_mosaic.version = 11 : i64} {
  func.func @_mse_kernel(%arg0: i32, %arg1: i32, %arg2: memref<16x128xf32, #tpu.memory_space<vmem>>, %arg3: memref<16x128xf32, #tpu.memory_space<vmem>>, %arg4: memref<1x1xf32, #tpu.memory_space<smem>>, %arg5: memref<8x128xf32, #tpu.memory_space<vmem>>) attributes {dimension_semantics = [#tpu.dimension_semantics<parallel>, #tpu.dimension_semantics<arbitrary>], iteration_bounds = array<i64: 1, 1>, scalar_prefetch = 0 : i64, scratch_operands = 1 : i64, tpu.core_type = #tpu.core_type<tc>, window_params = [{transform_indices = @transform_0, window_bounds = array<i64: 16, 128>}, {transform_indices = @transform_1, window_bounds = array<i64: 16, 128>}, {transform_indices = @transform_2, window_bounds = array<i64: 1, 1>}]} {
    %c0 = arith.constant 0 : index
    %c0_0 = arith.constant 0 : index
    %0 = vector.load %arg2[%c0, %c0_0] : memref<16x128xf32, #tpu.memory_space<vmem>>, vector<16x128xf32>
    %c0_1 = arith.constant 0 : index
    %c0_2 = arith.constant 0 : index
    %1 = vector.load %arg3[%c0_1, %c0_2] : memref<16x128xf32, #tpu.memory_space<vmem>>, vector<16x128xf32>
    %2 = arith.subf %0, %1 : vector<16x128xf32>
    %3 = arith.mulf %2, %2 : vector<16x128xf32>
    %c0_i32 = arith.constant 0 : i32
    %4 = arith.cmpi eq, %arg1, %c0_i32 : i32
    %5 = arith.extui %4 : i1 to i32
    %c0_i32_3 = arith.constant 0 : i32
    %6 = arith.cmpi ne, %5, %c0_i32_3 : i32
    scf.if %6 {
      %cst_10 = arith.constant 0.000000e+00 : f32
      %15 = vector.broadcast %cst_10 : f32 to vector<8x128xf32>
      %c0_11 = arith.constant 0 : index
      %c0_12 = arith.constant 0 : index
      %16 = vector.load %arg5[%c0_11, %c0_12] : memref<8x128xf32, #tpu.memory_space<vmem>>, vector<8x128xf32>
      tpu.vector_store %arg5[%c0_11, %c0_12], %15 {strides = array<i32>} : memref<8x128xf32, #tpu.memory_space<vmem>>, vector<8x128xf32>,
    } else {
    }
    %c0_4 = arith.constant 0 : index
    %c0_5 = arith.constant 0 : index
    %7 = vector.load %arg5[%c0_4, %c0_5] : memref<8x128xf32, #tpu.memory_space<vmem>>, vector<8x128xf32>
    %8 = vector.shape_cast %3 : vector<16x128xf32> to vector<2x8x128xf32>
    %cst = arith.constant dense<0.000000e+00> : vector<8x128xf32>
    %9 = vector.multi_reduction <add>, %8, %cst [0] : vector<2x8x128xf32> to vector<8x128xf32>
    %10 = arith.addf %7, %9 : vector<8x128xf32>
    %c0_6 = arith.constant 0 : index
    %c0_7 = arith.constant 0 : index
    %11 = vector.load %arg5[%c0_6, %c0_7] : memref<8x128xf32, #tpu.memory_space<vmem>>, vector<8x128xf32>
    tpu.vector_store %arg5[%c0_6, %c0_7], %10 {strides = array<i32>} : memref<8x128xf32, #tpu.memory_space<vmem>>, vector<8x128xf32>,
    %c0_i32_8 = arith.constant 0 : i32
    %12 = arith.cmpi eq, %arg1, %c0_i32_8 : i32
    %13 = arith.extui %12 : i1 to i32
    %c0_i32_9 = arith.constant 0 : i32
    %14 = arith.cmpi ne, %13, %c0_i32_9 : i32
    scf.if %14 {
      %c0_10 = arith.constant 0 : index
      %c0_11 = arith.constant 0 : index
      %15 = vector.load %arg5[%c0_10, %c0_11] : memref<8x128xf32, #tpu.memory_space<vmem>>, vector<8x128xf32>
      %16 = vector.shape_cast %15 : vector<8x128xf32> to vector<1x8x128xf32>
      %cst_12 = arith.constant dense<0.000000e+00> : vector<1xf32>
      %17 = vector.multi_reduction <add>, %16, %cst_12 [1, 2] : vector<1x8x128xf32> to vector<1xf32>
      %18 = vector.shape_cast %17 : vector<1xf32> to vector<1x1x1xf32>
      %19 = vector.extract %18[0, 0, 0] : f32 from vector<1x1x1xf32>
      %c0_13 = arith.constant 0 : index
      %c0_14 = arith.constant 0 : index
      %20 = memref.load %arg4[%c0_13, %c0_14] : memref<1x1xf32, #tpu.memory_space<smem>>
      memref.store %19, %arg4[%c0_13, %c0_14] : memref<1x1xf32, #tpu.memory_space<smem>>
    } else {
    }
    return
  }
  func.func @transform_0(%arg0: i32, %arg1: i32) -> (i32, i32) {
    %c1_i32 = arith.constant 1 : i32
    %0 = arith.muli %arg0, %c1_i32 : i32
    %1 = arith.addi %0, %arg1 : i32
    %c0_i32 = arith.constant 0 : i32
    %c0_i32_0 = arith.constant 0 : i32
    return %1, %c0_i32 : i32, i32
  }
  func.func @transform_1(%arg0: i32, %arg1: i32) -> (i32, i32) {
    %c1_i32 = arith.constant 1 : i32
    %0 = arith.muli %arg0, %c1_i32 : i32
    %1 = arith.addi %0, %arg1 : i32
    %c0_i32 = arith.constant 0 : i32
    %c0_i32_0 = arith.constant 0 : i32
    return %1, %c0_i32 : i32, i32
  }
  func.func @transform_2(%arg0: i32, %arg1: i32) -> (i32, i32) {
    %c0_i32 = arith.constant 0 : i32
    %c0_i32_0 = arith.constant 0 : i32
    return %arg0, %c0_i32 : i32, i32
  }
}

</mosaic_0001>

<llo_original>
// kernel: tpu_custom_call.1
$region0: #{tpu_custom_call.1}
  #allocation0 [shape = 'u32[]', space=smem, size = 0x4, offset = 0x4, fixed_abs, tag = 'smem constant byte address 0x4 - core index']
  #allocation1 [shape = 'u32[144,128]{1,0:T(1,128)}', space=vmem, size = 0x12000, scoped, tag = 'internal scratch']
  #allocation2 [shape = 'f32[8,128]{1,0:T(8,128)}', space=vmem, size = 0x1000, scoped, tag = 'scratch operand']
  %s0 = inlined_call_operand.hbm [shape: f32[16,128], index: 0, kind: input, shape index: {}]
  %s1 = inlined_call_operand.hbm [shape: f32[16,128], index: 1, kind: input, shape index: {}]
  %s2 = inlined_call_operand.hbm [shape: f32[1,1], index: 2, kind: output, shape index: {}]
  %s3 = sld [smem:[#allocation0]]
  $region34: #{tpu_custom_call.1} parent=0
    _
  %s5 = ssub.s32 1, %s3
  %s6 = scalar_select 0, %s5, %s3
  $region1: #{tpu_custom_call.1} parent=0
    #allocation3 [shape = 'u8[8192]{0}', space=vmem, size = 0x2000, scoped, tag = 'input window, operand 0, single buffered']
    #allocation4 [shape = 's32[1]{0}', space=sflag, size = 0x4, scoped, tag = 'scoped memory for tpu_custom_call.1']
    #allocation5 [shape = 's32[1]{0}', space=sflag, size = 0x4, scoped, tag = 'scoped memory for tpu_custom_call.1']
    #allocation6 [shape = 'u8[8192]{0}', space=vmem, size = 0x2000, scoped, tag = 'input window, operand 1, single buffered']
    #allocation7 [shape = 's32[1]{0}', space=sflag, size = 0x4, scoped, tag = 'scoped memory for tpu_custom_call.1']
    #allocation8 [shape = 'u8[512]{0}', space=smem, size = 0x200, scoped, tag = 'output window, operand 0, single buffered']
    %7 = vsyncpa [#allocation4], 0
    %8 = vsyncpa [#allocation7], 0
    %9 = vsyncpa [#allocation5], 0
    // Predicated region
    $region2: #{tpu_custom_call.1} parent=1 // pred_check
      _
    $region3: #{tpu_custom_call.1} parent=1 // pred_check_branch
      %11 = sbr.rel (0) target = $region5
    $region4: #{tpu_custom_call.1} parent=1 // pred_region
      %s12 = sadd.s32 0, 0
      %s13 = smul.u32 2, %s12
      %s15 = ssub.s32 256, 256
      %16 = vsyncadd [#allocation4], %s15
      %s17 = smul.addr %s13, 128
      %s18 = scalar_lea.hbm %s0, %s17
      %s19 = sshll.u32 [#allocation3], 4
      %s20 = int_to_ptr.vmem [resolvable:$true] %s19
      %25 = dma.hbm_to_vmem [thread:$0]  %s18, 256, %s20, [#allocation4], 128, 128, 8
    $region5: #{tpu_custom_call.1} parent=1 // pred_fallthru
      _
    // Predicated region
    $region6: #{tpu_custom_call.1} parent=1 // pred_check
      _
    $region7: #{tpu_custom_call.1} parent=1 // pred_check_branch
      %27 = sbr.rel (0) target = $region9
    $region8: #{tpu_custom_call.1} parent=1 // pred_region
      %s28 = sadd.s32 0, 0
      %s29 = smul.u32 2, %s28
      %s31 = ssub.s32 256, 256
      %32 = vsyncadd [#allocation7], %s31
      %s33 = smul.addr %s29, 128
      %s34 = scalar_lea.hbm %s1, %s33
      %s35 = sshll.u32 [#allocation6], 4
      %s36 = int_to_ptr.vmem [resolvable:$true] %s35
      %41 = dma.hbm_to_vmem [thread:$0]  %s34, 256, %s36, [#allocation7], 128, 128, 8
    $region9: #{tpu_custom_call.1} parent=1 // pred_fallthru
      _
    // Predicated region
    $region10: #{tpu_custom_call.1} parent=1 // pred_check
      _
    $region11: #{tpu_custom_call.1} parent=1 // pred_check_branch
      %43 = sbr.rel (0) target = $region13
    $region12: #{tpu_custom_call.1} parent=1 // pred_region
      %44 = dma.done [#allocation4], 256
    $region13: #{tpu_custom_call.1} parent=1 // pred_fallthru
      _
    // Predicated region
    $region14: #{tpu_custom_call.1} parent=1 // pred_check
      _
    $region15: #{tpu_custom_call.1} parent=1 // pred_check_branch
      %46 = sbr.rel (0) target = $region17
    $region16: #{tpu_custom_call.1} parent=1 // pred_region
      %47 = dma.done [#allocation7], 256
    $region17: #{tpu_custom_call.1} parent=1 // pred_fallthru
      _
    %s48 = sadd.s32 0, 0
    %s49 = smul.u32 2, %s48
    %s50 = sadd.s32 0, 0
    %s51 = smul.u32 2, %s50
    %v52 = vld [vmem:[#allocation3] sm:$0xff]
    %v53 = vld [vmem:[#allocation3 + $0x8] sm:$0xff]
    %v54 = vld [vmem:[#allocation6] sm:$0xff]
    %v55 = vld [vmem:[#allocation6 + $0x8] sm:$0xff]
    %v56 = vsub.f32 %v52, %v54
    %v57 = vsub.f32 %v53, %v55
    %v58 = vmul.f32 %v56, %v56
    %v59 = vmul.f32 %v57, %v57
    %p60 = scmp.eq.s32.totalorder 0, 0
    // Predicated region
    $region18: #{tpu_custom_call.1} parent=1 // pred_check
      %p61 = pneg %p60
    $region19: #{tpu_custom_call.1} parent=1 // pred_check_branch
      %63 = sbr.rel (%p61) target = $region21
    $region20: #{tpu_custom_call.1} parent=1 // pred_region
      %64 = vst [vmem:[#allocation2] sm:$0xff] 0.0
    $region21: #{tpu_custom_call.1} parent=1 // pred_fallthru
      _
    %v65 = vld [vmem:[#allocation2] sm:$0xff]
    %v66 = vadd.f32 %v58, %v59
    %v67 = vadd.f32 %v65, %v66
    %68 = vst [vmem:[#allocation2] sm:$0xff] %v67
    // Predicated region
    $region22: #{tpu_custom_call.1} parent=1 // pred_check
      %p69 = pneg %p60
    $region23: #{tpu_custom_call.1} parent=1 // pred_check_branch
      %71 = sbr.rel (%p69) target = $region25
    $region24: #{tpu_custom_call.1} parent=1 // pred_region
      %v72 = vld [vmem:[#allocation2] sm:$0xff]
      %73 = vadd.xlane.f32.xlu0 %v72
      %v74 = vpop.xlane.xlu0 %73
      %v75 = vrot.slane %v74, 4
      %v76 = vadd.f32 %v74, %v75
      %v77 = vrot.slane %v76, 2
      %v78 = vadd.f32 %v76, %v77
      %v79 = vrot.slane %v78, 1
      %v80 = vadd.f32 %v78, %v79
      %s81 = vtos %v80
      %s82 = scalar_lea.smem [#allocation8], 0
      %83 = sst [smem:[%s82]] %s81
    $region25: #{tpu_custom_call.1} parent=1 // pred_fallthru
      _
    // Predicated region
    $region26: #{tpu_custom_call.1} parent=1 // pred_check
      _
    $region27: #{tpu_custom_call.1} parent=1 // pred_check_branch
      %85 = sbr.rel (0) target = $region29
    $region28: #{tpu_custom_call.1} parent=1 // pred_region
      %s87 = ssub.s32 16, 16
      %88 = vsyncadd [#allocation5], %s87
      %91 = dma.smem_to_hbm [#allocation8], 16, %s2, [#allocation5]
    $region29: #{tpu_custom_call.1} parent=1 // pred_fallthru
      _
    // Predicated region
    $region30: #{tpu_custom_call.1} parent=1 // pred_check
      _
    $region31: #{tpu_custom_call.1} parent=1 // pred_check_branch
      %93 = sbr.rel (0) target = $region33
    $region32: #{tpu_custom_call.1} parent=1 // pred_region
      %94 = dma.done [#allocation5], 16
    $region33: #{tpu_custom_call.1} parent=1 // pred_fallthru
      _
    %95 = sfence
    %96 = vsyncpa [#allocation4], 1
    %97 = vsyncpa [#allocation7], 1
    %98 = vsyncpa [#allocation5], 1

</llo_original>
